<compile_context>
chip_gen: v5e
topology: v5e:2x2
jax: 0.10.0
libtpu: 0.0.40
codegen_flags: <defaults>
</compile_context>

<pallas_src>
import functools

import jax
import jax.numpy as jnp
from jax import lax
from jax.experimental import pallas as pl
from jax.experimental.pallas import tpu as pltpu

LANES = 128


def _compact_loss_kernel(n_inner, tile_rows, valid_rows, needs_mask,
                         x_ref, out_ref, acc_ref):
    c = pl.program_id(0)          # outer (core-parallel) index
    j = pl.program_id(1)          # inner reduction index over row tiles

    @pl.when(j == 0)
    def _():
        acc_ref[...] = jnp.zeros_like(acc_ref)

    x = x_ref[...].astype(jnp.float32)          # (B, tile_rows, 128)
    # Batch reduction over axis 0 = elementwise adds of sublane-dense planes
    # (pure VALU work, no cross-sublane reduce in the hot loop).
    mean = jnp.mean(x, axis=0)                  # (tile_rows, 128)
    d = x - mean[None, :, :]
    sq = jnp.sum(d * d, axis=0)                 # (tile_rows, 128)

    if needs_mask:
        # Only emitted (at trace time) when the grid overshoots the real row
        # count: ragged last tile and/or clamped duplicate tiles of the
        # two-core split.  Select is safe even if the OOB data is NaN/Inf.
        t = c * n_inner + j
        row_ids = t * tile_rows + lax.broadcasted_iota(jnp.int32, sq.shape, 0)
        sq = jnp.where(row_ids < valid_rows, sq, 0.0)

    acc_ref[...] += sq

    @pl.when(j == n_inner - 1)
    def _():
        # One cross-sublane reduce per outer index; per-lane partials go to a
        # lane-dense (1, 1, 128) output, the final 128-lane sum + divide
        # happens in the wrapper.
        out_ref[...] = jnp.sum(acc_ref[...], axis=0,
                               keepdims=True).reshape(1, 1, LANES)


def _choose_tile_rows(batch, rows, itemsize, target_block_bytes=2 << 20):
    """Rows per block: ~2 MiB per input block, sublane-pack friendly."""
    # TODO(synk): also tile the batch axis when batch * 8 * 128 * itemsize
    # alone exceeds the VMEM budget (very large batch sizes).
    tr = target_block_bytes // max(1, batch * LANES * itemsize)
    if tr >= rows:
        return int(rows)                   # whole row range fits in one block
    tr = max(8, (tr // 8) * 8)             # (8, 128) block-shape constraint
    if tr >= 32:
        tr = (tr // 32) * 32               # dense sublanes also for bf16/int8
    return int(tr)


def compact_feature_loss(features, tile_rows=None):
    """features: (B, ...) array. Returns scalar f32 mean sq. deviation from batch mean."""
    B = features.shape[0]
    x = features.reshape(B, -1)                     # (B, F), native dtype
    F = x.shape[1]
    itemsize = x.dtype.itemsize

    # Minimal pad to the lane width so (B, R, 128) is a free minor-dim split.
    # Zero columns have zero batch mean and zero deviation -> contribute 0;
    # the divisor stays the original B*F, so the result is exact.
    F_pad = pl.cdiv(F, LANES) * LANES
    if F_pad != F:
        x = jnp.pad(x, ((0, 0), (0, F_pad - F)))
    R = F_pad // LANES
    x = x.reshape(B, R, LANES)

    if tile_rows is None:
        tile_rows = _choose_tile_rows(B, R, itemsize)
    tile_rows = int(min(tile_rows, R))
    n_tiles = pl.cdiv(R, tile_rows)

    # v7x: split the row tiles across the two TensorCores via a leading
    # "parallel" axis; each core reduces into its own row of the partials
    # output.  On single-TC chips this is just two cheap sequential passes.
    n_outer = 2 if n_tiles >= 2 else 1
    n_inner = pl.cdiv(n_tiles, n_outer)
    needs_mask = (n_outer * n_inner * tile_rows) != R

    if n_outer * n_inner == n_tiles:
        in_map = lambda c, j: (0, c * n_inner + j, 0)
    else:
        # Clamp the duplicate trailing tile so its DMA stays in-bounds; its
        # contribution is fully masked to zero in the kernel.
        in_map = lambda c, j: (0, jnp.minimum(c * n_inner + j, n_tiles - 1), 0)

    # VMEM budget: 2 double-buffered, sublane-padded input blocks + f32
    # accumulator + headroom, capped below the physical per-core VMEM.
    pack = 8 * max(1, 4 // itemsize)                # 8 f32 / 16 bf16 / 32 int8
    padded_rows = pl.cdiv(tile_rows, pack) * pack
    block_bytes = B * padded_rows * LANES * itemsize
    acc_bytes = pl.cdiv(tile_rows, 8) * 8 * LANES * 4
    try:
        vmem_cap = int(pltpu.get_tpu_info().vmem_capacity_bytes)
    except Exception:
        vmem_cap = 64 << 20                         # conservative: v7x per-TC
    cap = max(16 << 20, (vmem_cap * 3) // 4)        # ~48 MiB v7x, ~96 MiB v5e/v6e
    vmem_limit = int(min(cap,
                         max(16 << 20, 2 * block_bytes + acc_bytes + (4 << 20))))

    kernel = functools.partial(_compact_loss_kernel, n_inner, tile_rows, R,
                               needs_mask)

    partials = pl.pallas_call(
        kernel,
        out_shape=jax.ShapeDtypeStruct((n_outer, 1, LANES), jnp.float32),
        grid_spec=pltpu.PrefetchScalarGridSpec(
            num_scalar_prefetch=0,
            grid=(n_outer, n_inner),
            in_specs=[pl.BlockSpec((B, tile_rows, LANES), in_map)],
            out_specs=pl.BlockSpec((1, 1, LANES), lambda c, j: (c, 0, 0)),
            scratch_shapes=[pltpu.VMEM((tile_rows, LANES), jnp.float32)],
        ),
        compiler_params=pltpu.CompilerParams(
            dimension_semantics=("parallel", "arbitrary"),
            vmem_limit_bytes=vmem_limit,
        ),
    )(x)
    return jnp.sum(partials) / jnp.float32(B * F)


if __name__ == "__main__":
    key = jax.random.PRNGKey(0)

    # Case 1: small conv-feature input, NCHW, f32 (F = 1024, lane-aligned).
    B, C, H, W = 2, 4, 16, 16
    features = jax.random.normal(key, (B, C, H, W), dtype=jnp.float32)
    loss = jax.block_until_ready(compact_feature_loss(features))
    ref = jnp.mean((features - jnp.mean(features, axis=0)) ** 2)
    assert jnp.allclose(loss, ref, rtol=1e-5, atol=1e-6), (loss, ref)

    # Case 2: bf16 input with a ragged feature dim (F = 315) — exercises the
    # minimal lane-pad path and native-dtype (half-traffic) DMA.
    B2, C2, H2, W2 = 3, 5, 7, 9
    features2 = jax.random.normal(jax.random.PRNGKey(0), (B2, C2, H2, W2),
                                  dtype=jnp.bfloat16)
    loss2 = jax.block_until_ready(compact_feature_loss(features2))
    f2 = features2.astype(jnp.float32)
    ref2 = jnp.mean((f2 - jnp.mean(f2, axis=0)) ** 2)
    assert jnp.allclose(loss2, ref2, rtol=1e-4, atol=1e-6), (loss2, ref2)

    # Case 3: larger ragged case that exercises row tiling, the in-kernel
    # tail mask, and the two-TensorCore grid split.
    B3, F3 = 4, 40000
    x3 = jax.random.normal(jax.random.PRNGKey(0), (B3, F3), dtype=jnp.float32)
    loss3 = jax.block_until_ready(compact_feature_loss(x3, tile_rows=32))
    ref3 = jnp.mean((x3 - jnp.mean(x3, axis=0)) ** 2)
    assert jnp.allclose(loss3, ref3, rtol=1e-5, atol=1e-6), (loss3, ref3)

    print("KERNEL_OK")
</pallas_src>

<mosaic_0001>
module attributes {stable_mosaic.version = 11 : i64} {
  func.func @_compact_loss_kernel(%arg0: i32, %arg1: i32, %arg2: memref<2x8x128xf32, #tpu.memory_space<vmem>>, %arg3: memref<1x1x128xf32, #tpu.memory_space<vmem>>, %arg4: memref<8x128xf32, #tpu.memory_space<vmem>>) attributes {dimension_semantics = [#tpu.dimension_semantics<parallel>, #tpu.dimension_semantics<arbitrary>], iteration_bounds = array<i64: 1, 1>, scalar_prefetch = 0 : i64, scratch_operands = 1 : i64, tpu.core_type = #tpu.core_type<tc>, window_params = [{transform_indices = @transform_0, window_bounds = array<i64: 2, 8, 128>}, {transform_indices = @transform_1, window_bounds = array<i64: 1, 1, 128>}]} {
    %c0_i32 = arith.constant 0 : i32
    %0 = arith.cmpi eq, %arg1, %c0_i32 : i32
    %1 = arith.extui %0 : i1 to i32
    %c0_i32_0 = arith.constant 0 : i32
    %2 = arith.cmpi ne, %1, %c0_i32_0 : i32
    scf.if %2 {
      %cst_11 = arith.constant 0.000000e+00 : f32
      %18 = vector.broadcast %cst_11 : f32 to vector<8x128xf32>
      %c0_12 = arith.constant 0 : index
      %c0_13 = arith.constant 0 : index
      %19 = vector.load %arg4[%c0_12, %c0_13] : memref<8x128xf32, #tpu.memory_space<vmem>>, vector<8x128xf32>
      tpu.vector_store %arg4[%c0_12, %c0_13], %18 {strides = array<i32>} : memref<8x128xf32, #tpu.memory_space<vmem>>, vector<8x128xf32>,
    } else {
    }
    %c0 = arith.constant 0 : index
    %c0_1 = arith.constant 0 : index
    %c0_2 = arith.constant 0 : index
    %3 = vector.load %arg2[%c0, %c0_1, %c0_2] : memref<2x8x128xf32, #tpu.memory_space<vmem>>, vector<2x8x128xf32>
    %cst = arith.constant dense<0.000000e+00> : vector<8x128xf32>
    %4 = vector.multi_reduction <add>, %3, %cst [0] : vector<2x8x128xf32> to vector<8x128xf32>
    %cst_3 = arith.constant 2.000000e+00 : f32
    %5 = vector.broadcast %cst_3 : f32 to vector<8x128xf32>
    %6 = arith.divf %4, %5 : vector<8x128xf32>
    %7 = vector.shape_cast %6 : vector<8x128xf32> to vector<1x8x128xf32>
    %8 = vector.broadcast %7 : vector<1x8x128xf32> to vector<2x8x128xf32>
    %9 = arith.subf %3, %8 : vector<2x8x128xf32>
    %10 = arith.mulf %9, %9 : vector<2x8x128xf32>
    %cst_4 = arith.constant dense<0.000000e+00> : vector<8x128xf32>
    %11 = vector.multi_reduction <add>, %10, %cst_4 [0] : vector<2x8x128xf32> to vector<8x128xf32>
    %c0_5 = arith.constant 0 : index
    %c0_6 = arith.constant 0 : index
    %12 = vector.load %arg4[%c0_5, %c0_6] : memref<8x128xf32, #tpu.memory_space<vmem>>, vector<8x128xf32>
    %13 = arith.addf %12, %11 : vector<8x128xf32>
    %c0_7 = arith.constant 0 : index
    %c0_8 = arith.constant 0 : index
    %14 = vector.load %arg4[%c0_7, %c0_8] : memref<8x128xf32, #tpu.memory_space<vmem>>, vector<8x128xf32>
    tpu.vector_store %arg4[%c0_7, %c0_8], %13 {strides = array<i32>} : memref<8x128xf32, #tpu.memory_space<vmem>>, vector<8x128xf32>,
    %c0_i32_9 = arith.constant 0 : i32
    %15 = arith.cmpi eq, %arg1, %c0_i32_9 : i32
    %16 = arith.extui %15 : i1 to i32
    %c0_i32_10 = arith.constant 0 : i32
    %17 = arith.cmpi ne, %16, %c0_i32_10 : i32
    scf.if %17 {
      %c0_11 = arith.constant 0 : index
      %c0_12 = arith.constant 0 : index
      %18 = vector.load %arg4[%c0_11, %c0_12] : memref<8x128xf32, #tpu.memory_space<vmem>>, vector<8x128xf32>
      %cst_13 = arith.constant dense<0.000000e+00> : vector<128xf32>
      %19 = vector.multi_reduction <add>, %18, %cst_13 [0] : vector<8x128xf32> to vector<128xf32>
      %20 = vector.shape_cast %19 : vector<128xf32> to vector<1x128xf32>
      %21 = vector.shape_cast %20 : vector<1x128xf32> to vector<1x1x128xf32>
      %c0_14 = arith.constant 0 : index
      %c0_15 = arith.constant 0 : index
      %c0_16 = arith.constant 0 : index
      %22 = vector.load %arg3[%c0_14, %c0_15, %c0_16] : memref<1x1x128xf32, #tpu.memory_space<vmem>>, vector<1x1x128xf32>
      tpu.vector_store %arg3[%c0_14, %c0_15, %c0_16], %21 {strides = array<i32>} : memref<1x1x128xf32, #tpu.memory_space<vmem>>, vector<1x1x128xf32>,
    } else {
    }
    return
  }
  func.func @transform_0(%arg0: i32, %arg1: i32) -> (i32, i32, i32) {
    %c1_i32 = arith.constant 1 : i32
    %0 = arith.muli %arg0, %c1_i32 : i32
    %1 = arith.addi %0, %arg1 : i32
    %c0_i32 = arith.constant 0 : i32
    %c0_i32_0 = arith.constant 0 : i32
    %c0_i32_1 = arith.constant 0 : i32
    return %c0_i32, %1, %c0_i32_0 : i32, i32, i32
  }
  func.func @transform_1(%arg0: i32, %arg1: i32) -> (i32, i32, i32) {
    %c0_i32 = arith.constant 0 : i32
    %c0_i32_0 = arith.constant 0 : i32
    %c0_i32_1 = arith.constant 0 : i32
    return %arg0, %c0_i32, %c0_i32_0 : i32, i32, i32
  }
}

</mosaic_0001>

<llo_original>
// kernel: tpu_custom_call.1
$region0: #{tpu_custom_call.1}
  #allocation0 [shape = 'u32[]', space=smem, size = 0x4, offset = 0x4, fixed_abs, tag = 'smem constant byte address 0x4 - core index']
  #allocation1 [shape = 'u32[72,128]{1,0:T(1,128)}', space=vmem, size = 0x9000, scoped, tag = 'internal scratch']
  #allocation2 [shape = 'f32[8,128]{1,0:T(8,128)}', space=vmem, size = 0x1000, scoped, tag = 'scratch operand']
  %s0 = inlined_call_operand.hbm [shape: f32[2,8,128], index: 0, kind: input, shape index: {}]
  %s1 = inlined_call_operand.hbm [shape: f32[1,1,128], index: 1, kind: output, shape index: {}]
  %s2 = sld [smem:[#allocation0]]
  $region26: #{tpu_custom_call.1} parent=0
    _
  %s4 = ssub.s32 1, %s2
  %s5 = scalar_select 0, %s4, %s2
  $region1: #{tpu_custom_call.1} parent=0
    #allocation3 [shape = 'u8[8192]{0}', space=vmem, size = 0x2000, scoped, tag = 'input window, operand 0, single buffered']
    #allocation4 [shape = 's32[1]{0}', space=sflag, size = 0x4, scoped, tag = 'scoped memory for tpu_custom_call.1']
    #allocation5 [shape = 's32[1]{0}', space=sflag, size = 0x4, scoped, tag = 'scoped memory for tpu_custom_call.1']
    #allocation6 [shape = 'u8[512]{0}', space=vmem, size = 0x400, scoped, tag = 'output window, operand 0, single buffered']
    %6 = vsyncpa [#allocation4], 0
    %7 = vsyncpa [#allocation5], 0
    // Predicated region
    $region2: #{tpu_custom_call.1} parent=1 // pred_check
      _
    $region3: #{tpu_custom_call.1} parent=1 // pred_check_branch
      %9 = sbr.rel (0) target = $region5
    $region4: #{tpu_custom_call.1} parent=1 // pred_region
      %s10 = sadd.s32 0, 0
      %12 = vsyncadd [#allocation4], 0
      %s13 = smul.addr %s10, 8
      %s14 = scalar_lea.hbm %s0, %s13
      %s15 = sshll.u32 %s14, 4
      %s16 = int_to_ptr.hbm [resolvable:$true] %s15
      %s17 = sshll.u32 [#allocation3], 4
      %s18 = int_to_ptr.vmem [resolvable:$true] %s17
      %23 = dma.hbm_to_vmem [thread:$0]  %s16, 256, %s18, [#allocation4], 128, 128, 8
    $region5: #{tpu_custom_call.1} parent=1 // pred_fallthru
      _
    // Predicated region
    $region6: #{tpu_custom_call.1} parent=1 // pred_check
      _
    $region7: #{tpu_custom_call.1} parent=1 // pred_check_branch
      %25 = sbr.rel (0) target = $region9
    $region8: #{tpu_custom_call.1} parent=1 // pred_region
      %27 = dma.done [#allocation4], 256
    $region9: #{tpu_custom_call.1} parent=1 // pred_fallthru
      _
    %s28 = sadd.s32 0, 0
    %p29 = scmp.eq.s32.totalorder 0, 0
    // Predicated region
    $region10: #{tpu_custom_call.1} parent=1 // pred_check
      %p30 = pneg %p29
    $region11: #{tpu_custom_call.1} parent=1 // pred_check_branch
      %32 = sbr.rel (%p30) target = $region13
    $region12: #{tpu_custom_call.1} parent=1 // pred_region
      %33 = vst [vmem:[#allocation2] sm:$0xff] 0.0
    $region13: #{tpu_custom_call.1} parent=1 // pred_fallthru
      _
    %v34 = vld [vmem:[#allocation3] sm:$0xff]
    %v35 = vld [vmem:[#allocation3 + $0x8] sm:$0xff]
    %v36 = vadd.f32 %v34, %v35
    %v37 = vrcp.pop 2.0
    %v38 = vmul.f32 2.0, %v37
    %v39 = vsub.f32 1.0, %v38
    %v40 = vmul.f32 %v37, %v39
    %v41 = vadd.f32 %v37, %v40
    %vm42 = vweird.f32 %v37
    %v43 = vsel %vm42, %v37, %v41
    %v44 = vmul.f32 %v36, %v43
    %v45 = vsub.f32 %v34, %v44
    %v46 = vsub.f32 %v35, %v44
    %v47 = vmul.f32 %v45, %v45
    %v48 = vmul.f32 %v46, %v46
    %v49 = vadd.f32 %v47, %v48
    %v50 = vld [vmem:[#allocation2] sm:$0xff]
    %v51 = vadd.f32 %v50, %v49
    %52 = vst [vmem:[#allocation2] sm:$0xff] %v51
    // Predicated region
    $region14: #{tpu_custom_call.1} parent=1 // pred_check
      %p53 = pneg %p29
    $region15: #{tpu_custom_call.1} parent=1 // pred_check_branch
      %55 = sbr.rel (%p53) target = $region17
    $region16: #{tpu_custom_call.1} parent=1 // pred_region
      %v56 = vld [vmem:[#allocation2] sm:$0xff]
      %v57 = vrot.slane %v56, 4
      %v58 = vadd.f32 %v56, %v57
      %v59 = vrot.slane %v58, 2
      %v60 = vadd.f32 %v58, %v59
      %v61 = vrot.slane %v60, 1
      %v62 = vadd.f32 %v60, %v61
      %63 = vst [vmem:[#allocation6] sm:$0x1] %v62
    $region17: #{tpu_custom_call.1} parent=1 // pred_fallthru
      _
    // Predicated region
    $region18: #{tpu_custom_call.1} parent=1 // pred_check
      _
    $region19: #{tpu_custom_call.1} parent=1 // pred_check_branch
      %65 = sbr.rel (0) target = $region21
    $region20: #{tpu_custom_call.1} parent=1 // pred_region
      %67 = vsyncadd [#allocation5], 0
      %s69 = sshll.u32 [#allocation6], 4
      %s70 = int_to_ptr.vmem [resolvable:$true] %s69
      %s71 = sshll.u32 %s1, 4
      %s72 = int_to_ptr.hbm [resolvable:$true] %s71
      %74 = dma.vmem_to_hbm [thread:$0]  %s70, 16, %s72, [#allocation5]
    $region21: #{tpu_custom_call.1} parent=1 // pred_fallthru
      _
    // Predicated region
    $region22: #{tpu_custom_call.1} parent=1 // pred_check
      _
    $region23: #{tpu_custom_call.1} parent=1 // pred_check_branch
      %76 = sbr.rel (0) target = $region25
    $region24: #{tpu_custom_call.1} parent=1 // pred_region
      %78 = dma.done [#allocation5], 16
    $region25: #{tpu_custom_call.1} parent=1 // pred_fallthru
      _
    %79 = vsyncpa [#allocation4], 1
    %80 = vsyncpa [#allocation5], 1

</llo_original>
